<compile_context>
chip_gen: v5e
topology: v5e:2x2
jax: 0.10.0
libtpu: 0.0.40
codegen_flags: <defaults>
</compile_context>

<pallas_src>
import functools

import jax
import jax.numpy as jnp
from jax import lax
from jax.experimental import pallas as pl
from jax.experimental.pallas import tpu as pltpu


LEAKY_SLOPE = 0.01   # nn.LeakyReLU default negative_slope
BN_EPS = 1e-5        # nn.BatchNorm1d default eps


def _round_up(x, m):
    return (x + m - 1) // m * m


def _vmem_capacity_bytes():
    """Physical VMEM per TensorCore; conservative fallback if unavailable."""
    try:
        return int(pltpu.get_tpu_info().vmem_capacity_bytes)
    except Exception:
        return 64 * 1024 * 1024   # v7x-class worst case


# ----------------------------------------------------------------------------
# Fused path: one pallas_call, h resident in VMEM (no HBM round trip of h).
# ----------------------------------------------------------------------------
def _fused_kernel(x_ref, w1_ref, b1_ref, gamma_ref, beta_ref, w2_ref, b2_ref,
                  o_ref, h_scr, sum_scr, sq_scr, *,
                  tm, num_tiles, n_valid, need_mask, dim_out):
    i = pl.program_id(0)

    @pl.when(i == 0)
    def _():
        sum_scr[...] = jnp.zeros_like(sum_scr)
        sq_scr[...] = jnp.zeros_like(sq_scr)

    # fc1 + bias + LeakyReLU: bf16 MXU inputs, f32 accumulate / epilogue.
    x = x_ref[...].astype(jnp.bfloat16)
    h = jnp.dot(x, w1_ref[...], preferred_element_type=jnp.float32)
    h = h + b1_ref[...]
    h = jnp.where(h >= 0, h, LEAKY_SLOPE * h)

    # Partial BN statistics; padded batch rows are masked out of the stats.
    if need_mask:
        row = i * tm + lax.broadcasted_iota(jnp.int32, (tm, 1), 0)
        hm = jnp.where(row < n_valid, h, 0.0)
    else:
        hm = h
    sum_scr[...] += jnp.sum(hm, axis=0, keepdims=True)
    sq_scr[...] += jnp.sum(hm * hm, axis=0, keepdims=True)

    # Stage h in the resident VMEM scratch (f32: 8-row aligned dynamic store).
    r0 = pl.multiple_of(i * tm, 8)
    h_scr[pl.ds(r0, tm), :] = h

    # Last step: finalize BN, normalize resident h, run fc2 tile by tile.
    @pl.when(i == num_tiles - 1)
    def _():
        inv_n = 1.0 / n_valid
        mean = sum_scr[...] * inv_n                               # (1, dim_h_p)
        var = jnp.maximum(sq_scr[...] * inv_n - mean * mean, 0.0)
        scale = gamma_ref[...] * lax.rsqrt(var + BN_EPS)
        shift = beta_ref[...] - mean * scale

        @pl.loop(0, num_tiles)
        def _(t):
            s0 = pl.multiple_of(t * tm, 8)
            hf = h_scr[pl.ds(s0, tm), :]
            # bf16 round-trip keeps numerics identical to the HBM-staged path.
            hq = hf.astype(jnp.bfloat16).astype(jnp.float32)
            hn = (hq * scale + shift).astype(jnp.bfloat16)
            out = jnp.dot(hn, w2_ref[...], preferred_element_type=jnp.float32)
            out = out + b2_ref[...]
            o_ref[pl.ds(s0, tm), :] = out[:, :dim_out]


# ----------------------------------------------------------------------------
# Two-pass HBM-staged fallback (large N*dim_h).
# ----------------------------------------------------------------------------
def _fc1_stats_kernel(x_ref, w1_ref, b1_ref, h_ref, sum_ref, sq_ref, *,
                      tm, n_valid, need_mask):
    x = x_ref[...].astype(jnp.bfloat16)
    h = jnp.dot(x, w1_ref[...], preferred_element_type=jnp.float32)
    h = h + b1_ref[...]
    h = jnp.where(h >= 0, h, LEAKY_SLOPE * h)
    if need_mask:
        row = pl.program_id(0) * tm + lax.broadcasted_iota(jnp.int32, (tm, 1), 0)
        hm = jnp.where(row < n_valid, h, 0.0)
    else:
        hm = h
    # Two direct (1, 1, dim_h_p) stores -- no (2, dim_h) concat relayout.
    sum_ref[...] = jnp.sum(hm, axis=0, keepdims=True)[None]
    sq_ref[...] = jnp.sum(hm * hm, axis=0, keepdims=True)[None]
    h_ref[...] = h.astype(jnp.bfloat16)


def _fc2_kernel(h_ref, scale_ref, shift_ref, w2_ref, b2_ref, o_ref, *, dim_out):
    hf = h_ref[...].astype(jnp.float32)
    hn = (hf * scale_ref[...] + shift_ref[...]).astype(jnp.bfloat16)
    out = jnp.dot(hn, w2_ref[...], preferred_element_type=jnp.float32)
    out = out + b2_ref[...]
    o_ref[...] = out[:, :dim_out]


# ----------------------------------------------------------------------------
# Wrapper
# ----------------------------------------------------------------------------
def mlp_forward(x, w1, b1, gamma, beta, w2, b2, *, tm=None, mode="auto"):
    """x: (N, dim_in) -> (N, dim_out) float32.

    mode: "auto" (fused vs staged by VMEM budget), "fused", or "staged".
    """
    n, dim_in = x.shape
    dim_h = w1.shape[1]
    dim_out = w2.shape[1]

    # `.to(torch.float)`; a bf16 x is consumed directly (the kernel feeds the
    # MXU in bf16 anyway), avoiding a redundant HBM up-cast pass.
    if x.dtype != jnp.float32 and x.dtype != jnp.bfloat16:
        x = x.astype(jnp.float32)
    xbytes = jnp.dtype(x.dtype).itemsize

    # Lane-dense 128-aligned feature dims; HBM output stays unpadded.
    dim_h_p = _round_up(dim_h, 128)
    dim_out_p = _round_up(dim_out, 128)

    # ---- per-generation VMEM budget -> compiler limit + batch tile ---------
    cap = _vmem_capacity_bytes()
    vmem_limit = max(min(cap * 3 // 4, 96 * 1024 * 1024), 32 * 1024 * 1024)
    budget = int(vmem_limit * 0.85)

    dbl = 2  # assume double-buffering for every streamed/resident block
    # staged pass 1: resident w1/b1 + stats outs; per-row x, bf16 h, f32 temps
    fixed1 = dbl * (dim_in * dim_h_p * 2 + dim_h_p * 4 + 2 * dim_h_p * 4)
    row1 = dbl * (dim_in * xbytes + dim_h_p * 2) + dim_h_p * 6
    # staged pass 2: resident w2/scale/shift/b2; per-row h, out, temps
    fixed2 = dbl * (dim_h_p * dim_out_p * 2 + 2 * dim_h_p * 4 + dim_out_p * 4)
    row2 = dbl * (dim_h_p * 2 + dim_out * 4) + dim_h_p * 6 + dim_out_p * 4
    fixed_staged = max(fixed1, fixed2)
    row_staged = max(row1, row2)

    if tm is None:
        tm = 8
        for cand in (1024, 512, 256, 128, 64, 32, 16, 8):
            if fixed_staged + cand * row_staged <= budget:
                tm = cand
                break
    tm = max(8, _round_up(int(tm), 8))
    tm = min(tm, _round_up(n, 8))
    n_pad = _round_up(n, tm)
    num_tiles = n_pad // tm
    need_mask = (n_pad != n)

    if n_pad != n:
        x = jnp.pad(x, ((0, n_pad - n), (0, 0)))

    # ---- parameter prep (pad feature dims; MXU operands in bf16) ------------
    f32 = jnp.float32
    w1_p = jnp.pad(w1.astype(f32), ((0, 0), (0, dim_h_p - dim_h))).astype(jnp.bfloat16)
    b1_p = jnp.pad(b1.reshape(-1).astype(f32), (0, dim_h_p - dim_h)).reshape(1, dim_h_p)
    gamma_p = jnp.pad(gamma.reshape(-1).astype(f32), (0, dim_h_p - dim_h)).reshape(1, dim_h_p)
    beta_p = jnp.pad(beta.reshape(-1).astype(f32), (0, dim_h_p - dim_h)).reshape(1, dim_h_p)
    w2_p = jnp.pad(w2.astype(f32),
                   ((0, dim_h_p - dim_h), (0, dim_out_p - dim_out))).astype(jnp.bfloat16)
    b2_p = jnp.pad(b2.reshape(-1).astype(f32), (0, dim_out_p - dim_out)).reshape(1, dim_out_p)

    # ---- fused-path VMEM estimate -------------------------------------------
    fused_bytes = (
        n_pad * dim_h_p * 4                                         # h scratch (f32)
        + dbl * n_pad * dim_out * 4                                 # resident out block
        + dbl * (dim_in * dim_h_p * 2 + dim_h_p * dim_out_p * 2)    # w1, w2 (bf16)
        + dbl * (3 * dim_h_p * 4 + dim_out_p * 4)                   # b1, gamma, beta, b2
        + dbl * tm * dim_in * xbytes                                # streamed x tiles
        + tm * (dim_h_p * 12 + dim_out_p * 4))                      # f32/bf16 temps
    if mode == "fused":
        use_fused = True
    elif mode == "staged":
        use_fused = False
    else:
        use_fused = fused_bytes <= budget

    cparams = pltpu.CompilerParams(
        dimension_semantics=("arbitrary",) if use_fused else ("parallel",),
        vmem_limit_bytes=int(vmem_limit))

    if use_fused:
        kern = functools.partial(
            _fused_kernel, tm=tm, num_tiles=num_tiles, n_valid=n,
            need_mask=need_mask, dim_out=dim_out)
        out = pl.pallas_call(
            kern,
            out_shape=jax.ShapeDtypeStruct((n_pad, dim_out), jnp.float32),
            grid=(num_tiles,),
            in_specs=[pl.BlockSpec((tm, dim_in), lambda i: (i, 0)),
                      pl.BlockSpec((dim_in, dim_h_p), lambda i: (0, 0)),    # resident
                      pl.BlockSpec((1, dim_h_p), lambda i: (0, 0)),         # b1
                      pl.BlockSpec((1, dim_h_p), lambda i: (0, 0)),         # gamma
                      pl.BlockSpec((1, dim_h_p), lambda i: (0, 0)),         # beta
                      pl.BlockSpec((dim_h_p, dim_out_p), lambda i: (0, 0)), # w2
                      pl.BlockSpec((1, dim_out_p), lambda i: (0, 0))],      # b2
            out_specs=pl.BlockSpec((n_pad, dim_out), lambda i: (0, 0)),     # resident
            scratch_shapes=[pltpu.VMEM((n_pad, dim_h_p), jnp.float32),
                            pltpu.VMEM((1, dim_h_p), jnp.float32),
                            pltpu.VMEM((1, dim_h_p), jnp.float32)],
            compiler_params=cparams,
        )(x, w1_p, b1_p, gamma_p, beta_p, w2_p, b2_p)
        return out[:n]

    # ---------------------------- staged path --------------------------------
    kern1 = functools.partial(_fc1_stats_kernel, tm=tm, n_valid=n,
                              need_mask=need_mask)
    h, psum, psq = pl.pallas_call(
        kern1,
        out_shape=(jax.ShapeDtypeStruct((n_pad, dim_h_p), jnp.bfloat16),
                   jax.ShapeDtypeStruct((num_tiles, 1, dim_h_p), jnp.float32),
                   jax.ShapeDtypeStruct((num_tiles, 1, dim_h_p), jnp.float32)),
        grid=(num_tiles,),
        in_specs=[pl.BlockSpec((tm, dim_in), lambda i: (i, 0)),
                  pl.BlockSpec((dim_in, dim_h_p), lambda i: (0, 0)),   # resident
                  pl.BlockSpec((1, dim_h_p), lambda i: (0, 0))],       # resident
        out_specs=(pl.BlockSpec((tm, dim_h_p), lambda i: (i, 0)),
                   pl.BlockSpec((1, 1, dim_h_p), lambda i: (i, 0, 0)),
                   pl.BlockSpec((1, 1, dim_h_p), lambda i: (i, 0, 0))),
        compiler_params=cparams,
    )(x, w1_p, b1_p)

    # Finalize BN batch statistics (tiny XLA glue, O(dim_h)).
    mean = jnp.sum(psum, axis=(0, 1)) / n
    var = jnp.maximum(jnp.sum(psq, axis=(0, 1)) / n - mean * mean, 0.0)
    scale = (gamma_p.reshape(-1) * lax.rsqrt(var + BN_EPS)).reshape(1, dim_h_p)
    shift = (beta_p.reshape(-1) - mean * scale.reshape(-1)).reshape(1, dim_h_p)

    kern2 = functools.partial(_fc2_kernel, dim_out=dim_out)
    out = pl.pallas_call(
        kern2,
        out_shape=jax.ShapeDtypeStruct((n_pad, dim_out), jnp.float32),
        grid=(num_tiles,),
        in_specs=[pl.BlockSpec((tm, dim_h_p), lambda i: (i, 0)),
                  pl.BlockSpec((1, dim_h_p), lambda i: (0, 0)),          # scale
                  pl.BlockSpec((1, dim_h_p), lambda i: (0, 0)),          # shift
                  pl.BlockSpec((dim_h_p, dim_out_p), lambda i: (0, 0)),  # resident
                  pl.BlockSpec((1, dim_out_p), lambda i: (0, 0))],       # resident
        out_specs=pl.BlockSpec((tm, dim_out), lambda i: (i, 0)),
        compiler_params=cparams,
    )(h, scale, shift, w2_p, b2_p)
    return out[:n]


# ----------------------------------------------------------------------------
# Init + pure-JAX reference (mirrors the kernel's bf16-MXU / f32-math path)
# ----------------------------------------------------------------------------
def init_params(key, dim_in, dim_h, dim_out):
    k1, k2, k3, k4 = jax.random.split(key, 4)
    bound1 = 1.0 / (dim_in ** 0.5)
    bound2 = 1.0 / (dim_h ** 0.5)
    # stored as (in, out) -- transposed vs PyTorch's (out, in)
    w1 = jax.random.uniform(k1, (dim_in, dim_h), jnp.float32, -bound1, bound1)
    b1 = jax.random.uniform(k2, (dim_h,), jnp.float32, -bound1, bound1)
    w2 = jax.random.uniform(k3, (dim_h, dim_out), jnp.float32, -bound2, bound2)
    b2 = jax.random.uniform(k4, (dim_out,), jnp.float32, -bound2, bound2)
    gamma = jnp.ones((dim_h,), jnp.float32)   # BatchNorm1d weight at init
    beta = jnp.zeros((dim_h,), jnp.float32)   # BatchNorm1d bias at init
    return w1, b1, gamma, beta, w2, b2


def reference_forward(x, w1, b1, gamma, beta, w2, b2):
    x = x.astype(jnp.float32)
    h = jnp.dot(x.astype(jnp.bfloat16), w1.astype(jnp.bfloat16),
                preferred_element_type=jnp.float32) + b1.reshape(1, -1)
    h = jnp.where(h >= 0, h, LEAKY_SLOPE * h)
    mean = jnp.mean(h, axis=0, keepdims=True)
    var = jnp.mean((h - mean) ** 2, axis=0, keepdims=True)
    scale = gamma.reshape(1, -1) * lax.rsqrt(var + BN_EPS)
    shift = beta.reshape(1, -1) - mean * scale
    hq = h.astype(jnp.bfloat16).astype(jnp.float32)   # kernel stages h in bf16
    hn = (hq * scale + shift).astype(jnp.bfloat16)
    return jnp.dot(hn, w2.astype(jnp.bfloat16),
                   preferred_element_type=jnp.float32) + b2.reshape(1, -1)


if __name__ == "__main__":
    # Small shapes; N chosen to exercise multi-tile + padded-last-tile masking.
    N, DIM_IN, DIM_H, DIM_OUT = 20, 16, 32, 2

    key = jax.random.PRNGKey(0)
    kx, kp = jax.random.split(key)
    x = jax.random.normal(kx, (N, DIM_IN), jnp.float32)
    params = init_params(kp, DIM_IN, DIM_H, DIM_OUT)

    ref = reference_forward(x, *params)

    out_auto = mlp_forward(x, *params)                       # auto -> fused, 1 tile
    jax.block_until_ready(out_auto)
    out_fused = mlp_forward(x, *params, tm=8, mode="fused")  # multi-tile fused
    jax.block_until_ready(out_fused)
    out_staged = mlp_forward(x, *params, tm=8, mode="staged")  # HBM-staged fallback
    jax.block_until_ready(out_staged)

    for name, out in (("auto", out_auto), ("fused", out_fused),
                      ("staged", out_staged)):
        assert out.shape == (N, DIM_OUT), (name, out.shape)
        err = float(jnp.max(jnp.abs(out - ref)))
        assert jnp.allclose(out, ref, atol=2e-3, rtol=2e-3), (name, err)

    print("KERNEL_OK")
</pallas_src>

<mosaic_0001>
module attributes {stable_mosaic.version = 11 : i64} {
  func.func @_fused_kernel(%arg0: i32, %arg1: memref<24x16xf32, #tpu.memory_space<vmem>>, %arg2: memref<16x128xbf16, #tpu.memory_space<vmem>>, %arg3: memref<1x128xf32, #tpu.memory_space<vmem>>, %arg4: memref<1x128xf32, #tpu.memory_space<vmem>>, %arg5: memref<1x128xf32, #tpu.memory_space<vmem>>, %arg6: memref<128x128xbf16, #tpu.memory_space<vmem>>, %arg7: memref<1x128xf32, #tpu.memory_space<vmem>>, %arg8: memref<24x2xf32, #tpu.memory_space<vmem>>, %arg9: memref<24x128xf32, #tpu.memory_space<vmem>>, %arg10: memref<1x128xf32, #tpu.memory_space<vmem>>, %arg11: memref<1x128xf32, #tpu.memory_space<vmem>>) attributes {dimension_semantics = [#tpu.dimension_semantics<arbitrary>], iteration_bounds = array<i64: 1>, scalar_prefetch = 0 : i64, scratch_operands = 3 : i64, tpu.core_type = #tpu.core_type<tc>, window_params = [{transform_indices = @transform_0, window_bounds = array<i64: 24, 16>}, {pipeline_mode = #tpu.pipeline_mode<synchronous>, transform_indices = @transform_1, window_bounds = array<i64: 16, 128>}, {pipeline_mode = #tpu.pipeline_mode<synchronous>, transform_indices = @transform_2, window_bounds = array<i64: 1, 128>}, {pipeline_mode = #tpu.pipeline_mode<synchronous>, transform_indices = @transform_3, window_bounds = array<i64: 1, 128>}, {pipeline_mode = #tpu.pipeline_mode<synchronous>, transform_indices = @transform_4, window_bounds = array<i64: 1, 128>}, {pipeline_mode = #tpu.pipeline_mode<synchronous>, transform_indices = @transform_5, window_bounds = array<i64: 128, 128>}, {pipeline_mode = #tpu.pipeline_mode<synchronous>, transform_indices = @transform_6, window_bounds = array<i64: 1, 128>}, {pipeline_mode = #tpu.pipeline_mode<synchronous>, transform_indices = @transform_7, window_bounds = array<i64: 24, 2>}]} {
    %c0_i32 = arith.constant 0 : i32
    %0 = arith.cmpi eq, %arg0, %c0_i32 : i32
    %1 = arith.extui %0 : i1 to i32
    %c0_i32_0 = arith.constant 0 : i32
    %2 = arith.cmpi ne, %1, %c0_i32_0 : i32
    scf.if %2 {
      %cst_23 = arith.constant 0.000000e+00 : f32
      %43 = vector.broadcast %cst_23 : f32 to vector<1x128xf32>
      %c0_24 = arith.constant 0 : index
      %c0_25 = arith.constant 0 : index
      %44 = vector.load %arg10[%c0_24, %c0_25] : memref<1x128xf32, #tpu.memory_space<vmem>>, vector<1x128xf32>
      tpu.vector_store %arg10[%c0_24, %c0_25], %43 {strides = array<i32>} : memref<1x128xf32, #tpu.memory_space<vmem>>, vector<1x128xf32>,
      %cst_26 = arith.constant 0.000000e+00 : f32
      %45 = vector.broadcast %cst_26 : f32 to vector<1x128xf32>
      %c0_27 = arith.constant 0 : index
      %c0_28 = arith.constant 0 : index
      %46 = vector.load %arg11[%c0_27, %c0_28] : memref<1x128xf32, #tpu.memory_space<vmem>>, vector<1x128xf32>
      tpu.vector_store %arg11[%c0_27, %c0_28], %45 {strides = array<i32>} : memref<1x128xf32, #tpu.memory_space<vmem>>, vector<1x128xf32>,
    } else {
    }
    %c0 = arith.constant 0 : index
    %c0_1 = arith.constant 0 : index
    %3 = vector.load %arg1[%c0, %c0_1] : memref<24x16xf32, #tpu.memory_space<vmem>>, vector<24x16xf32>
    %4 = arith.truncf %3 : vector<24x16xf32> to vector<24x16xbf16>
    %c0_2 = arith.constant 0 : index
    %c0_3 = arith.constant 0 : index
    %5 = vector.load %arg2[%c0_2, %c0_3] : memref<16x128xbf16, #tpu.memory_space<vmem>>, vector<16x128xbf16>
    %cst = arith.constant dense<0.000000e+00> : vector<24x128xf32>
    %6 = tpu.matmul %4, %5, %cst {dimension_numbers = #tpu.dot_dimension_numbers<[1], [0], [0], [1], [0, 0, 1, 1], [], []>} : vector<24x16xbf16>, vector<16x128xbf16>, vector<24x128xf32> -> vector<24x128xf32>
    %c0_4 = arith.constant 0 : index
    %c0_5 = arith.constant 0 : index
    %7 = vector.load %arg3[%c0_4, %c0_5] : memref<1x128xf32, #tpu.memory_space<vmem>>, vector<1x128xf32>
    %8 = vector.broadcast %7 : vector<1x128xf32> to vector<24x128xf32>
    %9 = arith.addf %6, %8 : vector<24x128xf32>
    %cst_6 = arith.constant 0.000000e+00 : f32
    %10 = vector.broadcast %cst_6 : f32 to vector<24x128xf32>
    %11 = arith.cmpf oge, %9, %10 : vector<24x128xf32>
    %cst_7 = arith.constant 0.00999999977 : f32
    %12 = vector.broadcast %cst_7 : f32 to vector<24x128xf32>
    %13 = arith.mulf %12, %9 : vector<24x128xf32>
    %14 = arith.select %11, %9, %13 : vector<24x128xi1>, vector<24x128xf32>
    %c24_i32 = arith.constant 24 : i32
    %15 = arith.muli %arg0, %c24_i32 : i32
    %16 = tpu.iota {dimensions = array<i32: 0>} : vector<24x1xi32>
    %17 = vector.broadcast %15 : i32 to vector<24x1xi32>
    %18 = arith.addi %17, %16 : vector<24x1xi32>
    %c20_i32 = arith.constant 20 : i32
    %19 = vector.broadcast %c20_i32 : i32 to vector<24x1xi32>
    %20 = arith.cmpi slt, %18, %19 : vector<24x1xi32>
    %cst_8 = arith.constant 0.000000e+00 : f32
    %21 = vector.shape_cast %20 : vector<24x1xi1> to vector<24x1xi1>
    %22 = vector.broadcast %21 : vector<24x1xi1> to vector<24x128xi1>
    %23 = vector.broadcast %cst_8 : f32 to vector<24x128xf32>
    %24 = arith.select %22, %14, %23 : vector<24x128xi1>, vector<24x128xf32>
    %c0_9 = arith.constant 0 : index
    %c0_10 = arith.constant 0 : index
    %25 = vector.load %arg10[%c0_9, %c0_10] : memref<1x128xf32, #tpu.memory_space<vmem>>, vector<1x128xf32>
    %cst_11 = arith.constant dense<0.000000e+00> : vector<128xf32>
    %26 = vector.multi_reduction <add>, %24, %cst_11 [0] : vector<24x128xf32> to vector<128xf32>
    %27 = vector.shape_cast %26 : vector<128xf32> to vector<1x128xf32>
    %28 = arith.addf %25, %27 : vector<1x128xf32>
    %c0_12 = arith.constant 0 : index
    %c0_13 = arith.constant 0 : index
    %29 = vector.load %arg10[%c0_12, %c0_13] : memref<1x128xf32, #tpu.memory_space<vmem>>, vector<1x128xf32>
    tpu.vector_store %arg10[%c0_12, %c0_13], %28 {strides = array<i32>} : memref<1x128xf32, #tpu.memory_space<vmem>>, vector<1x128xf32>,
    %c0_14 = arith.constant 0 : index
    %c0_15 = arith.constant 0 : index
    %30 = vector.load %arg11[%c0_14, %c0_15] : memref<1x128xf32, #tpu.memory_space<vmem>>, vector<1x128xf32>
    %31 = arith.mulf %24, %24 : vector<24x128xf32>
    %cst_16 = arith.constant dense<0.000000e+00> : vector<128xf32>
    %32 = vector.multi_reduction <add>, %31, %cst_16 [0] : vector<24x128xf32> to vector<128xf32>
    %33 = vector.shape_cast %32 : vector<128xf32> to vector<1x128xf32>
    %34 = arith.addf %30, %33 : vector<1x128xf32>
    %c0_17 = arith.constant 0 : index
    %c0_18 = arith.constant 0 : index
    %35 = vector.load %arg11[%c0_17, %c0_18] : memref<1x128xf32, #tpu.memory_space<vmem>>, vector<1x128xf32>
    tpu.vector_store %arg11[%c0_17, %c0_18], %34 {strides = array<i32>} : memref<1x128xf32, #tpu.memory_space<vmem>>, vector<1x128xf32>,
    %c24_i32_19 = arith.constant 24 : i32
    %36 = arith.muli %arg0, %c24_i32_19 : i32
    %37 = tpu.assume_multiple %36, 8 : i32
    %38 = arith.index_cast %37 : i32 to index
    %c0_20 = arith.constant 0 : index
    %39 = vector.load %arg9[%38, %c0_20] : memref<24x128xf32, #tpu.memory_space<vmem>>, vector<24x128xf32>
    tpu.vector_store %arg9[%38, %c0_20], %14 {strides = array<i32>} : memref<24x128xf32, #tpu.memory_space<vmem>>, vector<24x128xf32>,
    %c0_i32_21 = arith.constant 0 : i32
    %40 = arith.cmpi eq, %arg0, %c0_i32_21 : i32
    %41 = arith.extui %40 : i1 to i32
    %c0_i32_22 = arith.constant 0 : i32
    %42 = arith.cmpi ne, %41, %c0_i32_22 : i32
    scf.if %42 {
      %c0_23 = arith.constant 0 : index
      %c0_24 = arith.constant 0 : index
      %43 = vector.load %arg10[%c0_23, %c0_24] : memref<1x128xf32, #tpu.memory_space<vmem>>, vector<1x128xf32>
      %cst_25 = arith.constant 5.000000e-02 : f32
      %44 = vector.broadcast %cst_25 : f32 to vector<1x128xf32>
      %45 = arith.mulf %43, %44 : vector<1x128xf32>
      %c0_26 = arith.constant 0 : index
      %c0_27 = arith.constant 0 : index
      %46 = vector.load %arg11[%c0_26, %c0_27] : memref<1x128xf32, #tpu.memory_space<vmem>>, vector<1x128xf32>
      %cst_28 = arith.constant 5.000000e-02 : f32
      %47 = vector.broadcast %cst_28 : f32 to vector<1x128xf32>
      %48 = arith.mulf %46, %47 : vector<1x128xf32>
      %49 = arith.mulf %45, %45 : vector<1x128xf32>
      %50 = arith.subf %48, %49 : vector<1x128xf32>
      %cst_29 = arith.constant 0.000000e+00 : f32
      %51 = vector.broadcast %cst_29 : f32 to vector<1x128xf32>
      %52 = arith.maximumf %50, %51 : vector<1x128xf32>
      %c0_30 = arith.constant 0 : index
      %c0_31 = arith.constant 0 : index
      %53 = vector.load %arg4[%c0_30, %c0_31] : memref<1x128xf32, #tpu.memory_space<vmem>>, vector<1x128xf32>
      %cst_32 = arith.constant 9.99999974E-6 : f32
      %54 = vector.broadcast %cst_32 : f32 to vector<1x128xf32>
      %55 = arith.addf %52, %54 : vector<1x128xf32>
      %56 = math.rsqrt %55 : vector<1x128xf32>
      %57 = arith.mulf %53, %56 : vector<1x128xf32>
      %c0_33 = arith.constant 0 : index
      %c0_34 = arith.constant 0 : index
      %58 = vector.load %arg5[%c0_33, %c0_34] : memref<1x128xf32, #tpu.memory_space<vmem>>, vector<1x128xf32>
      %59 = arith.mulf %45, %57 : vector<1x128xf32>
      %60 = arith.subf %58, %59 : vector<1x128xf32>
      %c0_i32_35 = arith.constant 0 : i32
      %c1_i32 = arith.constant 1 : i32
      %61 = arith.muli %c0_i32_35, %c1_i32 : i32
      %c0_i32_36 = arith.constant 0 : i32
      %62 = arith.addi %c0_i32_36, %61 : i32
      %c24_i32_37 = arith.constant 24 : i32
      %63 = arith.muli %62, %c24_i32_37 : i32
      %64 = tpu.assume_multiple %63, 8 : i32
      %65 = arith.index_cast %64 : i32 to index
      %c0_38 = arith.constant 0 : index
      %66 = vector.load %arg9[%65, %c0_38] : memref<24x128xf32, #tpu.memory_space<vmem>>, vector<24x128xf32>
      %67 = arith.truncf %66 : vector<24x128xf32> to vector<24x128xbf16>
      %68 = arith.extf %67 : vector<24x128xbf16> to vector<24x128xf32>
      %69 = vector.broadcast %57 : vector<1x128xf32> to vector<24x128xf32>
      %70 = arith.mulf %68, %69 : vector<24x128xf32>
      %71 = vector.broadcast %60 : vector<1x128xf32> to vector<24x128xf32>
      %72 = arith.addf %70, %71 : vector<24x128xf32>
      %73 = arith.truncf %72 : vector<24x128xf32> to vector<24x128xbf16>
      %c0_39 = arith.constant 0 : index
      %c0_40 = arith.constant 0 : index
      %74 = vector.load %arg6[%c0_39, %c0_40] : memref<128x128xbf16, #tpu.memory_space<vmem>>, vector<128x128xbf16>
      %cst_41 = arith.constant dense<0.000000e+00> : vector<24x128xf32>
      %75 = tpu.matmul %73, %74, %cst_41 {dimension_numbers = #tpu.dot_dimension_numbers<[1], [0], [0], [1], [0, 0, 1, 1], [], []>} : vector<24x128xbf16>, vector<128x128xbf16>, vector<24x128xf32> -> vector<24x128xf32>
      %c0_42 = arith.constant 0 : index
      %c0_43 = arith.constant 0 : index
      %76 = vector.load %arg7[%c0_42, %c0_43] : memref<1x128xf32, #tpu.memory_space<vmem>>, vector<1x128xf32>
      %77 = vector.broadcast %76 : vector<1x128xf32> to vector<24x128xf32>
      %78 = arith.addf %75, %77 : vector<24x128xf32>
      %79 = vector.extract_strided_slice %78 {offsets = [0, 0], sizes = [24, 2], strides = [1, 1]} : vector<24x128xf32> to vector<24x2xf32>
      %80 = arith.index_cast %64 : i32 to index
      %c0_44 = arith.constant 0 : index
      %81 = vector.load %arg8[%80, %c0_44] : memref<24x2xf32, #tpu.memory_space<vmem>>, vector<24x2xf32>
      tpu.vector_store %arg8[%80, %c0_44], %79 {strides = array<i32>} : memref<24x2xf32, #tpu.memory_space<vmem>>, vector<24x2xf32>,
      %c1_i32_45 = arith.constant 1 : i32
    } else {
    }
    return
  }
  func.func @transform_0(%arg0: i32) -> (i32, i32) {
    %c0_i32 = arith.constant 0 : i32
    %c0_i32_0 = arith.constant 0 : i32
    return %arg0, %c0_i32 : i32, i32
  }
  func.func @transform_1(%arg0: i32) -> (i32, i32) {
    %c0_i32 = arith.constant 0 : i32
    %c0_i32_0 = arith.constant 0 : i32
    %c0_i32_1 = arith.constant 0 : i32
    return %c0_i32, %c0_i32_0 : i32, i32
  }
  func.func @transform_2(%arg0: i32) -> (i32, i32) {
    %c0_i32 = arith.constant 0 : i32
    %c0_i32_0 = arith.constant 0 : i32
    %c0_i32_1 = arith.constant 0 : i32
    return %c0_i32, %c0_i32_0 : i32, i32
  }
  func.func @transform_3(%arg0: i32) -> (i32, i32) {
    %c0_i32 = arith.constant 0 : i32
    %c0_i32_0 = arith.constant 0 : i32
    %c0_i32_1 = arith.constant 0 : i32
    return %c0_i32, %c0_i32_0 : i32, i32
  }
  func.func @transform_4(%arg0: i32) -> (i32, i32) {
    %c0_i32 = arith.constant 0 : i32
    %c0_i32_0 = arith.constant 0 : i32
    %c0_i32_1 = arith.constant 0 : i32
    return %c0_i32, %c0_i32_0 : i32, i32
  }
  func.func @transform_5(%arg0: i32) -> (i32, i32) {
    %c0_i32 = arith.constant 0 : i32
    %c0_i32_0 = arith.constant 0 : i32
    %c0_i32_1 = arith.constant 0 : i32
    return %c0_i32, %c0_i32_0 : i32, i32
  }
  func.func @transform_6(%arg0: i32) -> (i32, i32) {
    %c0_i32 = arith.constant 0 : i32
    %c0_i32_0 = arith.constant 0 : i32
    %c0_i32_1 = arith.constant 0 : i32
    return %c0_i32, %c0_i32_0 : i32, i32
  }
  func.func @transform_7(%arg0: i32) -> (i32, i32) {
    %c0_i32 = arith.constant 0 : i32
    %c0_i32_0 = arith.constant 0 : i32
    %c0_i32_1 = arith.constant 0 : i32
    return %c0_i32, %c0_i32_0 : i32, i32
  }
}

</mosaic_0001>

<llo_original>
// kernel: tpu_custom_call.1
$region0: #{tpu_custom_call.1}
  #allocation0 [shape = 'u32[]', space=smem, size = 0x4, offset = 0x4, fixed_abs, tag = 'smem constant byte address 0x4 - core index']
  #allocation1 [shape = 'u32[72,128]{1,0:T(1,128)}', space=vmem, size = 0x9000, scoped, tag = 'internal scratch']
  #allocation2 [shape = 'f32[24,128]{1,0:T(8,128)}', space=vmem, size = 0x3000, scoped, tag = 'scratch operand']
  #allocation3 [shape = 'f32[1,128]{1,0:T(1,128)}', space=vmem, size = 0x200, scoped, tag = 'scratch operand']
  #allocation4 [shape = 'f32[1,128]{1,0:T(1,128)}', space=vmem, size = 0x200, scoped, tag = 'scratch operand']
  %s0 = inlined_call_operand.vmem [shape: f32[24,16], index: 0, kind: input, shape index: {}]
  %s1 = inlined_call_operand.vmem [shape: bf16[16,128], index: 1, kind: input, shape index: {}]
  %s2 = inlined_call_operand.vmem [shape: f32[1,128], index: 2, kind: input, shape index: {}]
  %s3 = inlined_call_operand.vmem [shape: f32[1,128], index: 3, kind: input, shape index: {}]
  %s4 = inlined_call_operand.vmem [shape: f32[1,128], index: 4, kind: input, shape index: {}]
  %s5 = inlined_call_operand.hbm [shape: bf16[128,128], index: 5, kind: input, shape index: {}]
  %s6 = inlined_call_operand.vmem [shape: f32[1,128], index: 6, kind: input, shape index: {}]
  %s7 = inlined_call_operand.vmem [shape: f32[24,2], index: 7, kind: output, shape index: {}]
  %s8 = sld [smem:[#allocation0]]
  $region50: #{tpu_custom_call.1} parent=0
    _
  %s10 = ssub.s32 1, %s8
  %s11 = scalar_select 0, %s10, %s8
  $region1: #{tpu_custom_call.1} parent=0
    #allocation5 [shape = 'u8[32768]{0}', space=vmem, size = 0x8000, scoped, tag = 'input window, operand 5, single buffered']
    #allocation6 [shape = 's32[1]{0}', space=sflag, size = 0x4, scoped, tag = 'scoped memory for tpu_custom_call.1']
    %12 = vsyncpa [#allocation6], 0
    // Predicated region
    $region2: #{tpu_custom_call.1} parent=1 // pred_check
      _
    $region3: #{tpu_custom_call.1} parent=1 // pred_check_branch
      %14 = sbr.rel (0) target = $region5
    $region4: #{tpu_custom_call.1} parent=1 // pred_region
      _
    $region5: #{tpu_custom_call.1} parent=1 // pred_fallthru
      _
    // Predicated region
    $region6: #{tpu_custom_call.1} parent=1 // pred_check
      _
    $region7: #{tpu_custom_call.1} parent=1 // pred_check_branch
      %16 = sbr.rel (0) target = $region9
    $region8: #{tpu_custom_call.1} parent=1 // pred_region
      _
    $region9: #{tpu_custom_call.1} parent=1 // pred_fallthru
      _
    // Predicated region
    $region10: #{tpu_custom_call.1} parent=1 // pred_check
      _
    $region11: #{tpu_custom_call.1} parent=1 // pred_check_branch
      %18 = sbr.rel (0) target = $region13
    $region12: #{tpu_custom_call.1} parent=1 // pred_region
      _
    $region13: #{tpu_custom_call.1} parent=1 // pred_fallthru
      _
    // Predicated region
    $region14: #{tpu_custom_call.1} parent=1 // pred_check
      _
    $region15: #{tpu_custom_call.1} parent=1 // pred_check_branch
      %20 = sbr.rel (0) target = $region17
    $region16: #{tpu_custom_call.1} parent=1 // pred_region
      _
    $region17: #{tpu_custom_call.1} parent=1 // pred_fallthru
      _
    // Predicated region
    $region18: #{tpu_custom_call.1} parent=1 // pred_check
      _
    $region19: #{tpu_custom_call.1} parent=1 // pred_check_branch
      %22 = sbr.rel (0) target = $region21
    $region20: #{tpu_custom_call.1} parent=1 // pred_region
      _
    $region21: #{tpu_custom_call.1} parent=1 // pred_fallthru
      _
    // Predicated region
    $region22: #{tpu_custom_call.1} parent=1 // pred_check
      _
    $region23: #{tpu_custom_call.1} parent=1 // pred_check_branch
      %24 = sbr.rel (0) target = $region25
    $region24: #{tpu_custom_call.1} parent=1 // pred_region
      %26 = vsyncadd [#allocation6], 0
      %s27 = sshll.u32 %s5, 4
      %s28 = int_to_ptr.hbm [resolvable:$true] %s27
      %s29 = sshll.u32 [#allocation5], 4
      %s30 = int_to_ptr.vmem [resolvable:$true] %s29
      %35 = dma.hbm_to_vmem [thread:$0]  %s28, 1024, %s30, [#allocation6], 64, 64, 4
    $region25: #{tpu_custom_call.1} parent=1 // pred_fallthru
      _
    // Predicated region
    $region26: #{tpu_custom_call.1} parent=1 // pred_check
      _
    $region27: #{tpu_custom_call.1} parent=1 // pred_check_branch
      %37 = sbr.rel (0) target = $region29
    $region28: #{tpu_custom_call.1} parent=1 // pred_region
      _
    $region29: #{tpu_custom_call.1} parent=1 // pred_fallthru
      _
    // Predicated region
    $region30: #{tpu_custom_call.1} parent=1 // pred_check
      _
    $region31: #{tpu_custom_call.1} parent=1 // pred_check_branch
      %39 = sbr.rel (0) target = $region33
    $region32: #{tpu_custom_call.1} parent=1 // pred_region
      %41 = dma.done [#allocation6], 1024
    $region33: #{tpu_custom_call.1} parent=1 // pred_fallthru
      _
    %p43 = scmp.eq.s32.totalorder 0, 0
    // Predicated region
    $region34: #{tpu_custom_call.1} parent=1 // pred_check
      %p44 = pneg %p43
    $region35: #{tpu_custom_call.1} parent=1 // pred_check_branch
      %46 = sbr.rel (%p44) target = $region37
    $region36: #{tpu_custom_call.1} parent=1 // pred_region
      %47 = vst [vmem:[#allocation3] sm:$0x1] 0.0
      %48 = vst [vmem:[#allocation4] sm:$0x1] 0.0
    $region37: #{tpu_custom_call.1} parent=1 // pred_fallthru
      _
    %v49 = vld [vmem:[%s0] sm:$0xff]
    %v50 = vld [vmem:[%s0 + $0x8] sm:$0xff]
    %v51 = vld [vmem:[%s0 + $0x10] sm:$0xff]
    %v52 = vpack.c.bf16 %v50, %v49
    %v53 = vpack.c.bf16 %v51, %v51
    %v54 = vld [vmem:[%s1] sm:$0xf]
    %v55 = vld [vmem:[%s1 + $0x4] sm:$0xf]
    %v56 = vld [vmem:[%s2] sm:$0x1]
    %v58 = vperm.slane %v56, 0
    %v62 = vunpack.c.l.b16 %v54
    %v63 = vunpack.c.l.b16 %v55
    %v64 = vpack.c.b16 %v63, %v62
    %vm66 = vcmask 130048
    %v68 = vsel %vm66, %v52, 0
    %v71 = vsel %vm66, %v53, 0
    %73 = vmatpush.bf16.msra.mxu0 0
    %74 = vmatpush.bf16.msra.mxu0 0
    %75 = vmatpush.bf16.msra.mxu0 0
    %76 = vmatpush.bf16.msra.mxu0 0
    %77 = vmatpush.bf16.msra.mxu0 0
    %78 = vmatpush.bf16.msra.mxu0 0
    %79 = vmatpush.bf16.msra.mxu0 0
    %80 = vmatpush.bf16.msra.mxu0 %v64
    %81 = vmatmul.bf16.gmra.mxu0 %v68
    %v82 = vpop.f32.mrf.mxu0
    %v83 = vadd.f32 %v58, %v82
    %v84 = vpop.f32.mrf.mxu0
    %v85 = vadd.f32 %v58, %v84
    %86 = vmatmul.bf16.gmra.mxu0 %v71
    %v87 = vpop.f32.mrf.mxu0
    %v88 = vadd.f32 %v58, %v87
    %v89 = vpop.f32.mrf.mxu0
    %90 = vdwg.mxu0
    %vm91 = vcmp.ge.f32.partialorder %v83, 0.0
    %vm92 = vcmp.ge.f32.partialorder %v85, 0.0
    %vm93 = vcmp.ge.f32.partialorder %v88, 0.0
    %v94 = vmul.f32 %v83, 0.01
    %v95 = vmul.f32 %v85, 0.01
    %v96 = vmul.f32 %v88, 0.01
    %v97 = vsel %vm91, %v83, %v94
    %v98 = vsel %vm92, %v85, %v95
    %v99 = vsel %vm93, %v88, %v96
    %s100 = smul.u32 0, 24
    %v101 = vlaneseq
    %v102 = vshrl.u32 %v101, 7
    %v103 = vadd.s32 %v102, 8
    %v104 = vadd.s32 %v102, 16
    %v105 = vstv %s100
    %v106 = vadd.s32 %v105, %v102
    %v107 = vadd.s32 %v105, %v103
    %v108 = vadd.s32 %v105, %v104
    %vm109 = vcmp.lt.s32.totalorder %v106, 20
    %vm110 = vcmp.lt.s32.totalorder %v107, 20
    %vm111 = vcmp.lt.s32.totalorder %v108, 20
    %v112 = vsel %vm109, 1, 0
    %v113 = vsel %vm110, 1, 0
    %v114 = vsel %vm111, 1, 0
    %vm115 = vcmp.eq.s32.totalorder %v112, 1
    %vm116 = vcmp.eq.s32.totalorder %v113, 1
    %vm117 = vcmp.eq.s32.totalorder %v114, 1
    %v118 = vsel %vm115, %v97, 0.0
    %v119 = vsel %vm116, %v98, 0.0
    %v120 = vsel %vm117, %v99, 0.0
    %v121 = vld [vmem:[#allocation3] sm:$0x1]
    %v122 = vadd.f32 %v118, %v119
    %v123 = vadd.f32 %v122, %v120
    %v124 = vrot.slane %v123, 4
    %v125 = vadd.f32 %v123, %v124
    %v126 = vrot.slane %v125, 2
    %v127 = vadd.f32 %v125, %v126
    %v128 = vrot.slane %v127, 1
    %v129 = vadd.f32 %v127, %v128
    %v130 = vadd.f32 %v121, %v129
    %131 = vst [vmem:[#allocation3] sm:$0x1] %v130
    %v132 = vld [vmem:[#allocation4] sm:$0x1]
    %v133 = vmul.f32 %v118, %v118
    %v134 = vmul.f32 %v119, %v119
    %v135 = vmul.f32 %v120, %v120
    %v136 = vadd.f32 %v133, %v134
    %v137 = vadd.f32 %v136, %v135
    %v138 = vrot.slane %v137, 4
    %v139 = vadd.f32 %v137, %v138
    %v140 = vrot.slane %v139, 2
    %v141 = vadd.f32 %v139, %v140
    %v142 = vrot.slane %v141, 1
    %v143 = vadd.f32 %v141, %v142
    %v144 = vadd.f32 %v132, %v143
    %145 = vst [vmem:[#allocation4] sm:$0x1] %v144
    %s146 = scalar_lea.vmem [#allocation2], %s100
    %147 = vst [vmem:[%s146] sm:$0xff] %v97
    %148 = vst [vmem:[%s146 + $0x8] sm:$0xff] %v98
    %149 = vst [vmem:[%s146 + $0x10] sm:$0xff] %v99
    // Predicated region
    $region38: #{tpu_custom_call.1} parent=1 // pred_check
      %p150 = pneg %p43
    $region39: #{tpu_custom_call.1} parent=1 // pred_check_branch
      %152 = sbr.rel (%p150) target = $region41
    $region40: #{tpu_custom_call.1} parent=1 // pred_region
      %v153 = vld [vmem:[#allocation3] sm:$0x1]
      %v154 = vmul.f32 %v153, 0.05
      %v155 = vld [vmem:[#allocation4] sm:$0x1]
      %v156 = vmul.f32 %v155, 0.05
      %v157 = vmul.f32 %v154, %v154
      %v158 = vsub.f32 %v156, %v157
      %v159 = vmax.f32 %v158, 0.0
      %v160 = vld [vmem:[%s3] sm:$0x1]
      %v161 = vadd.f32 %v159, 1e-05
      %v162 = vrsqrt.pop %v161
      %v163 = vmul.f32 %v162, %v161
      %v164 = vmul.f32 %v163, %v162
      %v165 = vmul.f32 0.5, %v164
      %v166 = vsub.f32 1.5, %v165
      %v167 = vmul.f32 %v162, %v166
      %vm168 = vweird.f32 %v161
      %vm169 = vweird.f32 %v162
      %vm170 = vmor %vm168, %vm169
      %v171 = vsel %vm170, %v162, %v167
      %v172 = vmul.f32 %v160, %v171
      %v173 = vld [vmem:[%s4] sm:$0x1]
      %v174 = vmul.f32 %v154, %v172
      %v175 = vsub.f32 %v173, %v174
      %v176 = vld [vmem:[#allocation2] sm:$0xff]
      %v177 = vld [vmem:[#allocation2 + $0x8] sm:$0xff]
      %v178 = vld [vmem:[#allocation2 + $0x10] sm:$0xff]
      %v179 = vpack.c.bf16 %v176, %v176
      %v180 = vpack.c.bf16 %v177, %v177
      %v181 = vpack.c.bf16 %v178, %v178
      %v182 = vunpack.c.l.bf16 %v179
      %v183 = vunpack.c.l.bf16 %v180
      %v184 = vunpack.c.l.bf16 %v181
      %v186 = vperm.slane %v172, 0
      %v188 = vmul.f32 %v182, %v186
      %v189 = vmul.f32 %v183, %v186
      %v190 = vmul.f32 %v184, %v186
      %v192 = vperm.slane %v175, 0
      %v194 = vadd.f32 %v188, %v192
      %v195 = vadd.f32 %v189, %v192
      %v196 = vadd.f32 %v190, %v192
      %v197 = vpack.c.bf16 %v195, %v194
      %v198 = vpack.c.bf16 %v196, %v196
      %v199 = vld [vmem:[#allocation5] sm:$0xf]
      %v200 = vld [vmem:[#allocation5 + $0x4] sm:$0xf]
      %v201 = vld [vmem:[#allocation5 + $0x8] sm:$0xf]
      %v202 = vld [vmem:[#allocation5 + $0xc] sm:$0xf]
      %v203 = vld [vmem:[#allocation5 + $0x10] sm:$0xf]
      %v204 = vld [vmem:[#allocation5 + $0x14] sm:$0xf]
      %v205 = vld [vmem:[#allocation5 + $0x18] sm:$0xf]
      %v206 = vld [vmem:[#allocation5 + $0x1c] sm:$0xf]
      %v207 = vld [vmem:[#allocation5 + $0x20] sm:$0xf]
      %v208 = vld [vmem:[#allocation5 + $0x24] sm:$0xf]
      %v209 = vld [vmem:[#allocation5 + $0x28] sm:$0xf]
      %v210 = vld [vmem:[#allocation5 + $0x2c] sm:$0xf]
      %v211 = vld [vmem:[#allocation5 + $0x30] sm:$0xf]
      %v212 = vld [vmem:[#allocation5 + $0x34] sm:$0xf]
      %v213 = vld [vmem:[#allocation5 + $0x38] sm:$0xf]
      %v214 = vld [vmem:[#allocation5 + $0x3c] sm:$0xf]
      %v215 = vld [vmem:[%s6] sm:$0x1]
      %v217 = vperm.slane %v215, 0
      %v235 = vunpack.c.l.b16 %v199
      %v236 = vunpack.c.l.b16 %v200
      %v237 = vunpack.c.l.b16 %v201
      %v238 = vunpack.c.l.b16 %v202
      %v239 = vunpack.c.l.b16 %v203
      %v240 = vunpack.c.l.b16 %v204
      %v241 = vunpack.c.l.b16 %v205
      %v242 = vunpack.c.l.b16 %v206
      %v243 = vunpack.c.l.b16 %v207
      %v244 = vunpack.c.l.b16 %v208
      %v245 = vunpack.c.l.b16 %v209
      %v246 = vunpack.c.l.b16 %v210
      %v247 = vunpack.c.l.b16 %v211
      %v248 = vunpack.c.l.b16 %v212
      %v249 = vunpack.c.l.b16 %v213
      %v250 = vunpack.c.l.b16 %v214
      %v251 = vpack.c.b16 %v236, %v235
      %v252 = vpack.c.b16 %v238, %v237
      %v253 = vpack.c.b16 %v240, %v239
      %v254 = vpack.c.b16 %v242, %v241
      %v255 = vpack.c.b16 %v244, %v243
      %v256 = vpack.c.b16 %v246, %v245
      %v257 = vpack.c.b16 %v248, %v247
      %v258 = vpack.c.b16 %v250, %v249
      %267 = vmatpush.bf16.msra.mxu0 %v258
      %268 = vmatpush.bf16.msra.mxu0 %v257
      %269 = vmatpush.bf16.msra.mxu0 %v256
      %270 = vmatpush.bf16.msra.mxu0 %v255
      %271 = vmatpush.bf16.msra.mxu0 %v254
      %272 = vmatpush.bf16.msra.mxu0 %v253
      %273 = vmatpush.bf16.msra.mxu0 %v252
      %274 = vmatpush.bf16.msra.mxu0 %v251
      %275 = vmatmul.bf16.gmra.mxu0 %v197
      %v276 = vpop.f32.mrf.mxu0
      %v277 = vadd.f32 %v217, %v276
      %v278 = vpop.f32.mrf.mxu0
      %v279 = vadd.f32 %v217, %v278
      %280 = vmatmul.bf16.gmra.mxu0 %v198
      %v281 = vpop.f32.mrf.mxu0
      %v282 = vadd.f32 %v217, %v281
      %v283 = vpop.f32.mrf.mxu0
      %284 = vdwg.mxu0
      %vm285 = vcmask 15360
      %286 = vst.msk [vmem:[%s7] sm:$0xff] %vm285, %v277
      %287 = vst.msk [vmem:[%s7 + $0x8] sm:$0xff] %vm285, %v279
      %288 = vst.msk [vmem:[%s7 + $0x10] sm:$0xff] %vm285, %v282
    $region41: #{tpu_custom_call.1} parent=1 // pred_fallthru
      _
    // Predicated region
    $region42: #{tpu_custom_call.1} parent=1 // pred_check
      _
    $region43: #{tpu_custom_call.1} parent=1 // pred_check_branch
      %290 = sbr.rel (0) target = $region45
    $region44: #{tpu_custom_call.1} parent=1 // pred_region
      _
    $region45: #{tpu_custom_call.1} parent=1 // pred_fallthru
      _
    // Predicated region
    $region46: #{tpu_custom_call.1} parent=1 // pred_check
      _
    $region47: #{tpu_custom_call.1} parent=1 // pred_check_branch
      %292 = sbr.rel (0) target = $region49
    $region48: #{tpu_custom_call.1} parent=1 // pred_region
      _
    $region49: #{tpu_custom_call.1} parent=1 // pred_fallthru
      _
    %293 = vsyncpa [#allocation6], 1

</llo_original>
